<compile_context>
chip_gen: v7x
topology: tpu7x:2x2x1
jax: 0.10.0
libtpu: 0.0.40
codegen_flags: <defaults>
</compile_context>

<pallas_src>
import functools

import jax
import jax.numpy as jnp
import numpy as np
from jax import lax
from jax.experimental import pallas as pl
from jax.experimental.pallas import tpu as pltpu


def _round_up(x, m):
    return (x + m - 1) // m * m


def _pick_divisor(n, target):
    """Largest d <= target with n % d == 0."""
    d = max(1, min(n, target))
    while n % d:
        d -= 1
    return d


def _const_spec(block_shape, index_map, single):
    """BlockSpec for a (near-)constant-index weight block.

    single=True requests single-buffering (pl.Buffered(1)) so constant weights
    are not pointlessly double-buffered (halves their VMEM footprint).
    """
    if single:
        return pl.BlockSpec(block_shape, index_map, pipeline_mode=pl.Buffered(1))
    return pl.BlockSpec(block_shape, index_map)


def _vmem_limit_bytes(est_bytes):
    """Scoped-VMEM limit: 2x the static block-size estimate + slack, capped
    per generation (v7x has only 64 MiB physical VMEM)."""
    cap = 64 << 20
    try:
        cap = int(pltpu.get_tpu_info().vmem_capacity_bytes)
    except Exception:
        pass
    return int(min(max(2 * est_bytes + (4 << 20), 32 << 20), int(cap * 0.9)))


# ----------------------------------------------------------------------------
# Kernel 1: input projection, hoisted out of the recurrence.
#   gx[d] = x @ W_ih[d] + b[d]      (row-tiled, direction on a parallel axis)
# ----------------------------------------------------------------------------
def input_proj_kernel(x_ref, w_ref, b_ref, gx_ref):
    gx_ref[...] = (jnp.dot(x_ref[...], w_ref[...],
                           preferred_element_type=jnp.float32)
                   + b_ref[...]).astype(gx_ref.dtype)


# ----------------------------------------------------------------------------
# Kernel 2: single-direction recurrence, tc timesteps per grid step, with the
# BatchNorm batch statistics fused in.  grid = (direction, chunk).
# ----------------------------------------------------------------------------
def lstm_dir_kernel(gx_ref, whh_ref, out_ref, stat_ref,
                    h_sc, c_sc, s1_sc, s2_sc, *,
                    b_real, t_real, mask_time, mask_batch):
    d = pl.program_id(0)                     # 0 = forward, 1 = backward
    c = pl.program_id(1)                     # chunk step (sequential)
    nci = pl.num_programs(1)
    hid = whh_ref.shape[0]                   # H
    bp = h_sc.shape[0]                       # padded batch
    tc = gx_ref.shape[0] // bp               # timesteps in this chunk

    @pl.when(c == 0)
    def _():
        h_sc[...] = jnp.zeros_like(h_sc)
        c_sc[...] = jnp.zeros_like(c_sc)
        s1_sc[...] = jnp.zeros_like(s1_sc)
        s2_sc[...] = jnp.zeros_like(s2_sc)

    # Absolute-time chunk this grid step maps to (backward walks chunks in
    # reverse; the gx/out BlockSpecs use the same mapping).
    cb = jnp.where(d == 0, c, nci - 1 - c)

    def body(s, carry):
        t_local = jnp.where(d == 0, s, tc - 1 - s)   # backward: reverse in chunk
        off = pl.multiple_of(t_local * bp, bp)

        h_prev = h_sc[...]
        c_prev = c_sc[...]
        # One (Bp, H) @ (H, 4H) MXU dot for THIS direction only.
        g = jnp.dot(h_prev, whh_ref[...], preferred_element_type=jnp.float32)
        g = g + gx_ref[pl.ds(off, bp), :].astype(jnp.float32)
        # PyTorch gate order i, f, g, o; gate elementwise math stays f32.
        i_g = jax.nn.sigmoid(g[:, 0 * hid:1 * hid])
        f_g = jax.nn.sigmoid(g[:, 1 * hid:2 * hid])
        g_g = jnp.tanh(g[:, 2 * hid:3 * hid])
        o_g = jax.nn.sigmoid(g[:, 3 * hid:4 * hid])
        c_raw = f_g * c_prev + i_g * g_g
        h_raw = o_g * jnp.tanh(c_raw)

        if mask_time:
            # Zero-padded timesteps: carry state through (keeps the backward
            # direction's init at exactly zero) and drop their BN contribution.
            t_abs = cb * tc + t_local
            valid = t_abs < t_real
            h_new = jnp.where(valid, h_raw, h_prev)
            c_new = jnp.where(valid, c_raw, c_prev)
            contrib = jnp.where(valid, h_new, 0.0)
        else:
            h_new, c_new, contrib = h_raw, c_raw, h_raw

        h_sc[...] = h_new
        c_sc[...] = c_new
        out_ref[pl.ds(off, bp), :] = h_new
        # Fused BatchNorm statistics: VPU filler under the MXU/EUP chain.
        s1_sc[...] += contrib
        s2_sc[...] += contrib * contrib
        return carry

    lax.fori_loop(0, tc, body, 0, unroll=True)

    @pl.when(c == nci - 1)
    def _():
        s1 = s1_sc[...]
        s2 = s2_sc[...]
        if mask_batch:                       # drop zero-padded batch rows
            rid = lax.broadcasted_iota(jnp.int32, (s1.shape[0], 1), 0)
            m = (rid < b_real).astype(jnp.float32)
            s1 = s1 * m
            s2 = s2 * m
        stat_ref[...] = jnp.concatenate(
            [jnp.sum(s1, axis=0, keepdims=True),
             jnp.sum(s2, axis=0, keepdims=True)], axis=0)     # (2, H)


# ----------------------------------------------------------------------------
# Kernel 3: fused BN affine + embedding matmul (lane-dense padded out columns).
# ----------------------------------------------------------------------------
def bn_apply_kernel(rec_ref, sf_ref, tf_ref, sb_ref, tb_ref,
                    wf_ref, wb_ref, be_ref, out_ref):
    nf = rec_ref[0] * sf_ref[...] + tf_ref[...]
    nb = rec_ref[1] * sb_ref[...] + tb_ref[...]
    out_ref[...] = (jnp.dot(nf, wf_ref[...], preferred_element_type=jnp.float32)
                    + jnp.dot(nb, wb_ref[...], preferred_element_type=jnp.float32)
                    + be_ref[...])


# ----------------------------------------------------------------------------
# Wrapper
# ----------------------------------------------------------------------------
def _bilstm_forward_impl(x, params, *, time_chunk, row_target, gx_dtype,
                         single_buffer_weights):
    T, B, Cin = x.shape
    H = params["whh_f"].shape[0]
    Cout = params["w_emb"].shape[1]
    f32 = jnp.float32
    gx_isz = jnp.dtype(gx_dtype).itemsize

    # ---- static layout choices ----------------------------------------------
    sub = 16 if gx_isz == 2 else 8           # sublane tile of the gx dtype
    Bp = _round_up(B, sub)                   # padded batch
    tc = max(1, min(time_chunk, T))          # timesteps per recurrent chunk
    Tp = _round_up(T, tc)                    # padded seq len (never tc=1 fallback)
    n_chunks = Tp // tc
    ts = _pick_divisor(Tp, max(1, min(Tp, row_target // Bp)))
    n_tiles = Tp // ts
    rows = Tp * Bp
    rt = ts * Bp                             # rows per tile (mem-bound kernels)
    rec_rows = tc * Bp                       # rows per recurrent chunk
    Cp = _round_up(Cout, 128)                # lane-dense embedding output

    # ---- weight packing (tiny once-per-call XLA glue) -----------------------
    wih_s = jnp.stack([params["wih_f"], params["wih_b"]])        # (2, Cin, 4H)
    b_s = jnp.stack([params["b_f"], params["b_b"]])              # (2, 1, 4H)
    whh_s = jnp.stack([params["whh_f"], params["whh_b"]])        # (2, H, 4H)
    w_emb_p = jnp.zeros((2 * H, Cp), f32).at[:, :Cout].set(params["w_emb"])
    b_emb_p = jnp.zeros((1, Cp), f32).at[:, :Cout].set(params["b_emb"])
    wf, wb = w_emb_p[:H], w_emb_p[H:]

    # ---- pad (T, B) with zeros and flatten to rows ---------------------------
    if Tp != T or Bp != B:
        x = jnp.pad(x, ((0, Tp - T), (0, Bp - B), (0, 0)))
    x2 = x.reshape(rows, Cin)

    cspec = functools.partial(_const_spec, single=single_buffer_weights)

    # ---- 1) input projection (hoisted out of the recurrence) -----------------
    est1 = 2 * rt * Cin * 4 + (Cin * 4 * H + 4 * H) * 4 + 2 * rt * 4 * H * gx_isz
    gx = pl.pallas_call(
        input_proj_kernel,
        grid=(2, n_tiles),
        in_specs=[
            pl.BlockSpec((rt, Cin), lambda d, r: (r, 0)),
            cspec((None, Cin, 4 * H), lambda d, r: (d, 0, 0)),
            cspec((None, 1, 4 * H), lambda d, r: (d, 0, 0)),
        ],
        out_specs=pl.BlockSpec((None, rt, 4 * H), lambda d, r: (d, r, 0)),
        out_shape=jax.ShapeDtypeStruct((2, rows, 4 * H), gx_dtype),
        compiler_params=pltpu.CompilerParams(
            dimension_semantics=("parallel", "parallel"),
            vmem_limit_bytes=_vmem_limit_bytes(est1)),
    )(x2, wih_s, b_s)

    # ---- 2) recurrence: forward / backward on a parallel grid axis -----------
    est2 = (2 * rec_rows * 4 * H * gx_isz + H * 4 * H * 4
            + 2 * rec_rows * H * 4 + 4 * H * 4 + 4 * Bp * H * 4)
    rec, stats = pl.pallas_call(
        functools.partial(lstm_dir_kernel, b_real=B, t_real=T,
                          mask_time=(Tp != T), mask_batch=(Bp != B)),
        grid=(2, n_chunks),
        in_specs=[
            pl.BlockSpec((None, rec_rows, 4 * H),
                         lambda d, c: (d, (1 - d) * c + d * (n_chunks - 1 - c), 0)),
            cspec((None, H, 4 * H), lambda d, c: (d, 0, 0)),
        ],
        out_specs=[
            pl.BlockSpec((None, rec_rows, H),
                         lambda d, c: (d, (1 - d) * c + d * (n_chunks - 1 - c), 0)),
            pl.BlockSpec((None, 2, H), lambda d, c: (d, 0, 0)),
        ],
        out_shape=(jax.ShapeDtypeStruct((2, rows, H), f32),
                   jax.ShapeDtypeStruct((2, 2, H), f32)),
        scratch_shapes=[pltpu.VMEM((Bp, H), f32)] * 4,
        compiler_params=pltpu.CompilerParams(
            dimension_semantics=("parallel", "arbitrary"),
            vmem_limit_bytes=_vmem_limit_bytes(est2)),
    )(gx, whh_s)

    # ---- 3) fold batch statistics into per-feature scale/shift (tiny glue) ---
    n = jnp.float32(T * B)
    ssum = jnp.concatenate([stats[0, 0], stats[1, 0]])
    ssq = jnp.concatenate([stats[0, 1], stats[1, 1]])
    mean = ssum / n
    var = jnp.maximum(ssq / n - mean * mean, 0.0)          # biased variance
    scale = params["bn_gamma"].reshape(-1) * lax.rsqrt(var + 1e-5)
    shift = params["bn_beta"].reshape(-1) - mean * scale
    sf, sb = scale[:H].reshape(1, H), scale[H:].reshape(1, H)
    tf, tb = shift[:H].reshape(1, H), shift[H:].reshape(1, H)

    # ---- 4) BN affine + embedding (lane-dense padded output) ------------------
    est4 = 2 * 2 * rt * H * 4 + (4 * H + 2 * H * Cp + Cp) * 4 + 2 * rt * Cp * 4
    out_p = pl.pallas_call(
        bn_apply_kernel,
        grid=(n_tiles,),
        in_specs=[
            pl.BlockSpec((2, rt, H), lambda r: (0, r, 0)),
            cspec((1, H), lambda r: (0, 0)),
            cspec((1, H), lambda r: (0, 0)),
            cspec((1, H), lambda r: (0, 0)),
            cspec((1, H), lambda r: (0, 0)),
            cspec((H, Cp), lambda r: (0, 0)),
            cspec((H, Cp), lambda r: (0, 0)),
            cspec((1, Cp), lambda r: (0, 0)),
        ],
        out_specs=pl.BlockSpec((rt, Cp), lambda r: (r, 0)),
        out_shape=jax.ShapeDtypeStruct((rows, Cp), f32),
        compiler_params=pltpu.CompilerParams(
            dimension_semantics=("parallel",),
            vmem_limit_bytes=_vmem_limit_bytes(est4)),
    )(rec, sf, tf, sb, tb, wf, wb, b_emb_p)

    return out_p.reshape(Tp, Bp, Cp)[:T, :B, :Cout]


def bilstm_forward(x, params, *, time_chunk=16, row_target=512,
                   gx_dtype=jnp.bfloat16):
    try:
        return _bilstm_forward_impl(x, params, time_chunk=time_chunk,
                                    row_target=row_target, gx_dtype=gx_dtype,
                                    single_buffer_weights=True)
    except Exception:
        # Fallback for Pallas versions without pipeline_mode=pl.Buffered support
        # (or if single-buffering is rejected); same semantics, double-buffered
        # weights.
        return _bilstm_forward_impl(x, params, time_chunk=time_chunk,
                                    row_target=row_target, gx_dtype=gx_dtype,
                                    single_buffer_weights=False)


# ----------------------------------------------------------------------------
# Deterministic parameter init (PyTorch-style uniform init, synthetic weights).
# ----------------------------------------------------------------------------
def init_params(key, in_channels, hidden_channels, out_channels):
    H = hidden_channels
    k_lstm = 1.0 / np.sqrt(H)
    k_lin = 1.0 / np.sqrt(2 * H)
    keys = jax.random.split(key, 10)

    def u(k, shape, scale):
        return jax.random.uniform(k, shape, jnp.float32, -scale, scale)

    params = {
        # weights stored pre-transposed: x @ wih, h @ whh; gate order i,f,g,o
        "wih_f": u(keys[0], (in_channels, 4 * H), k_lstm),
        "whh_f": u(keys[1], (H, 4 * H), k_lstm),
        "b_f":   u(keys[2], (1, 4 * H), k_lstm) + u(keys[3], (1, 4 * H), k_lstm),
        "wih_b": u(keys[4], (in_channels, 4 * H), k_lstm),
        "whh_b": u(keys[5], (H, 4 * H), k_lstm),
        "b_b":   u(keys[6], (1, 4 * H), k_lstm) + u(keys[7], (1, 4 * H), k_lstm),
        # BatchNorm1d defaults: gamma = 1, beta = 0 (training-mode batch stats)
        "bn_gamma": jnp.ones((1, 2 * H), jnp.float32),
        "bn_beta":  jnp.zeros((1, 2 * H), jnp.float32),
        # TODO(synk): MaskedLinear's mask is not defined in the given snippet;
        # its forward is implemented here as a plain Linear layer.
        "w_emb": u(keys[8], (2 * H, out_channels), k_lin),
        "b_emb": u(keys[9], (1, out_channels), k_lin),
    }
    return params


# ----------------------------------------------------------------------------
# Pure-JAX reference for validation.
# ----------------------------------------------------------------------------
def reference_forward(x, params):
    T, B, _ = x.shape
    H = params["whh_f"].shape[0]

    def run_dir(xs, wih, whh, b):
        def step(carry, xt):
            h, c = carry
            g = xt @ wih + h @ whh + b
            i_g = jax.nn.sigmoid(g[:, :H])
            f_g = jax.nn.sigmoid(g[:, H:2 * H])
            g_g = jnp.tanh(g[:, 2 * H:3 * H])
            o_g = jax.nn.sigmoid(g[:, 3 * H:])
            c = f_g * c + i_g * g_g
            h = o_g * jnp.tanh(c)
            return (h, c), h
        init = (jnp.zeros((B, H), jnp.float32), jnp.zeros((B, H), jnp.float32))
        _, hs = lax.scan(step, init, xs)
        return hs

    fwd = run_dir(x, params["wih_f"], params["whh_f"], params["b_f"])
    bwd = run_dir(x[::-1], params["wih_b"], params["whh_b"], params["b_b"])[::-1]
    rec = jnp.concatenate([fwd, bwd], axis=-1).reshape(T * B, 2 * H)
    mean = jnp.mean(rec, axis=0, keepdims=True)
    var = jnp.mean(jnp.square(rec - mean), axis=0, keepdims=True)
    norm = (rec - mean) * lax.rsqrt(var + 1e-5)
    norm = norm * params["bn_gamma"] + params["bn_beta"]
    out = norm @ params["w_emb"] + params["b_emb"]
    return out.reshape(T, B, -1)


if __name__ == "__main__":
    SEQ, BATCH = 8, 2
    IN_CH, HIDDEN, OUT_CH = 16, 32, 16

    key = jax.random.PRNGKey(0)
    k_x, k_p = jax.random.split(key)
    x = jax.random.normal(k_x, (SEQ, BATCH, IN_CH), jnp.float32)
    params = init_params(k_p, IN_CH, HIDDEN, OUT_CH)
    ref = jax.block_until_ready(reference_forward(x, params))

    # 1) strict f32 check: multi-chunk recurrence (2 chunks), padded batch.
    out = jax.block_until_ready(
        bilstm_forward(x, params, time_chunk=4, gx_dtype=jnp.float32))
    assert out.shape == (SEQ, BATCH, OUT_CH), out.shape
    np.testing.assert_allclose(np.asarray(out), np.asarray(ref),
                               rtol=1e-4, atol=1e-4)

    # 2) strict f32 check: awkward time chunk -> T padded 8 -> 9, 3 chunks,
    #    exercising the padded-timestep masking of state and BN statistics.
    out = jax.block_until_ready(
        bilstm_forward(x, params, time_chunk=3, gx_dtype=jnp.float32))
    np.testing.assert_allclose(np.asarray(out), np.asarray(ref),
                               rtol=1e-4, atol=1e-4)

    # 3) production-style defaults: bf16 gx storage (looser tolerance; the
    #    strict correctness check is the f32 runs above).
    out = jax.block_until_ready(bilstm_forward(x, params))
    np.testing.assert_allclose(np.asarray(out), np.asarray(ref),
                               rtol=1e-1, atol=1.5e-1)

    print("KERNEL_OK")
</pallas_src>

<mosaic_0001>
module attributes {stable_mosaic.version = 11 : i64} {
  func.func @input_proj_kernel(%arg0: i32, %arg1: i32, %arg2: memref<64x16xf32, #tpu.memory_space<vmem>>, %arg3: memref<1x16x128xf32, #tpu.memory_space<vmem>>, %arg4: memref<1x1x128xf32, #tpu.memory_space<vmem>>, %arg5: memref<1x64x128xf32, #tpu.memory_space<vmem>>) attributes {dimension_semantics = [#tpu.dimension_semantics<parallel>, #tpu.dimension_semantics<parallel>], iteration_bounds = array<i64: 2, 1>, scalar_prefetch = 0 : i64, scratch_operands = 0 : i64, tpu.core_type = #tpu.core_type<tc>, window_params = [{transform_indices = @transform_0, window_bounds = array<i64: 64, 16>}, {pipeline_mode = #tpu.pipeline_mode<synchronous>, transform_indices = @transform_1, window_bounds = array<i64: 1, 16, 128>}, {pipeline_mode = #tpu.pipeline_mode<synchronous>, transform_indices = @transform_2, window_bounds = array<i64: 1, 1, 128>}, {transform_indices = @transform_3, window_bounds = array<i64: 1, 64, 128>}]} {
    %c0 = arith.constant 0 : index
    %c0_0 = arith.constant 0 : index
    %0 = vector.load %arg2[%c0, %c0_0] : memref<64x16xf32, #tpu.memory_space<vmem>>, vector<64x16xf32>
    %c0_1 = arith.constant 0 : index
    %c0_2 = arith.constant 0 : index
    %c0_3 = arith.constant 0 : index
    %1 = vector.load %arg3[%c0_1, %c0_2, %c0_3] : memref<1x16x128xf32, #tpu.memory_space<vmem>>, vector<1x16x128xf32>
    %2 = vector.shape_cast %1 : vector<1x16x128xf32> to vector<16x128xf32>
    %cst = arith.constant dense<0.000000e+00> : vector<64x128xf32>
    %3 = tpu.matmul %0, %2, %cst {dimension_numbers = #tpu.dot_dimension_numbers<[1], [0], [0], [1], [0, 0, 1, 1], [], []>} : vector<64x16xf32>, vector<16x128xf32>, vector<64x128xf32> -> vector<64x128xf32>
    %c0_4 = arith.constant 0 : index
    %c0_5 = arith.constant 0 : index
    %c0_6 = arith.constant 0 : index
    %4 = vector.load %arg4[%c0_4, %c0_5, %c0_6] : memref<1x1x128xf32, #tpu.memory_space<vmem>>, vector<1x1x128xf32>
    %5 = vector.shape_cast %4 : vector<1x1x128xf32> to vector<1x128xf32>
    %6 = vector.broadcast %5 : vector<1x128xf32> to vector<64x128xf32>
    %7 = arith.addf %3, %6 : vector<64x128xf32>
    %c0_7 = arith.constant 0 : index
    %c0_8 = arith.constant 0 : index
    %c0_9 = arith.constant 0 : index
    %8 = vector.load %arg5[%c0_7, %c0_8, %c0_9] : memref<1x64x128xf32, #tpu.memory_space<vmem>>, vector<1x64x128xf32>
    %9 = vector.shape_cast %8 : vector<1x64x128xf32> to vector<64x128xf32>
    %10 = vector.shape_cast %7 : vector<64x128xf32> to vector<1x64x128xf32>
    tpu.vector_store %arg5[%c0_7, %c0_8, %c0_9], %10 {strides = array<i32>} : memref<1x64x128xf32, #tpu.memory_space<vmem>>, vector<1x64x128xf32>,
    return
  }
  func.func @transform_0(%arg0: i32, %arg1: i32) -> (i32, i32) {
    %c0_i32 = arith.constant 0 : i32
    %c0_i32_0 = arith.constant 0 : i32
    return %arg1, %c0_i32 : i32, i32
  }
  func.func @transform_1(%arg0: i32, %arg1: i32) -> (i32, i32, i32) {
    %c0_i32 = arith.constant 0 : i32
    %c0_i32_0 = arith.constant 0 : i32
    %c0_i32_1 = arith.constant 0 : i32
    return %arg0, %c0_i32, %c0_i32_0 : i32, i32, i32
  }
  func.func @transform_2(%arg0: i32, %arg1: i32) -> (i32, i32, i32) {
    %c0_i32 = arith.constant 0 : i32
    %c0_i32_0 = arith.constant 0 : i32
    %c0_i32_1 = arith.constant 0 : i32
    return %arg0, %c0_i32, %c0_i32_0 : i32, i32, i32
  }
  func.func @transform_3(%arg0: i32, %arg1: i32) -> (i32, i32, i32) {
    %c0_i32 = arith.constant 0 : i32
    %c0_i32_0 = arith.constant 0 : i32
    return %arg0, %arg1, %c0_i32 : i32, i32, i32
  }
}

module attributes {stable_mosaic.version = 11 : i64} {
  func.func @input_proj_kernel(%arg0: i32, %arg1: i32, %arg2: memref<64x16xf32, #tpu.memory_space<vmem>>, %arg3: memref<1x16x128xf32, #tpu.memory_space<vmem>>, %arg4: memref<1x1x128xf32, #tpu.memory_space<vmem>>, %arg5: memref<1x64x128xf32, #tpu.memory_space<vmem>>) attributes {dimension_semantics = [#tpu.dimension_semantics<parallel>, #tpu.dimension_semantics<parallel>], iteration_bounds = array<i64: 2, 1>, scalar_prefetch = 0 : i64, scratch_operands = 0 : i64, tpu.core_type = #tpu.core_type<tc>, window_params = [{transform_indices = @transform_0, window_bounds = array<i64: 64, 16>}, {transform_indices = @transform_1, window_bounds = array<i64: 1, 16, 128>}, {transform_indices = @transform_2, window_bounds = array<i64: 1, 1, 128>}, {transform_indices = @transform_3, window_bounds = array<i64: 1, 64, 128>}]} {
    %c0 = arith.constant 0 : index
    %c0_0 = arith.constant 0 : index
    %0 = vector.load %arg2[%c0, %c0_0] : memref<64x16xf32, #tpu.memory_space<vmem>>, vector<64x16xf32>
    %c0_1 = arith.constant 0 : index
    %c0_2 = arith.constant 0 : index
    %c0_3 = arith.constant 0 : index
    %1 = vector.load %arg3[%c0_1, %c0_2, %c0_3] : memref<1x16x128xf32, #tpu.memory_space<vmem>>, vector<1x16x128xf32>
    %2 = vector.shape_cast %1 : vector<1x16x128xf32> to vector<16x128xf32>
    %cst = arith.constant dense<0.000000e+00> : vector<64x128xf32>
    %3 = tpu.matmul %0, %2, %cst {dimension_numbers = #tpu.dot_dimension_numbers<[1], [0], [0], [1], [0, 0, 1, 1], [], []>} : vector<64x16xf32>, vector<16x128xf32>, vector<64x128xf32> -> vector<64x128xf32>
    %c0_4 = arith.constant 0 : index
    %c0_5 = arith.constant 0 : index
    %c0_6 = arith.constant 0 : index
    %4 = vector.load %arg4[%c0_4, %c0_5, %c0_6] : memref<1x1x128xf32, #tpu.memory_space<vmem>>, vector<1x1x128xf32>
    %5 = vector.shape_cast %4 : vector<1x1x128xf32> to vector<1x128xf32>
    %6 = vector.broadcast %5 : vector<1x128xf32> to vector<64x128xf32>
    %7 = arith.addf %3, %6 : vector<64x128xf32>
    %c0_7 = arith.constant 0 : index
    %c0_8 = arith.constant 0 : index
    %c0_9 = arith.constant 0 : index
    %8 = vector.load %arg5[%c0_7, %c0_8, %c0_9] : memref<1x64x128xf32, #tpu.memory_space<vmem>>, vector<1x64x128xf32>
    %9 = vector.shape_cast %8 : vector<1x64x128xf32> to vector<64x128xf32>
    %10 = vector.shape_cast %7 : vector<64x128xf32> to vector<1x64x128xf32>
    tpu.vector_store %arg5[%c0_7, %c0_8, %c0_9], %10 {strides = array<i32>} : memref<1x64x128xf32, #tpu.memory_space<vmem>>, vector<1x64x128xf32>,
    return
  }
  func.func @transform_0(%arg0: i32, %arg1: i32) -> (i32, i32) {
    %c0_i32 = arith.constant 0 : i32
    %c0_i32_0 = arith.constant 0 : i32
    return %arg1, %c0_i32 : i32, i32
  }
  func.func @transform_1(%arg0: i32, %arg1: i32) -> (i32, i32, i32) {
    %c0_i32 = arith.constant 0 : i32
    %c0_i32_0 = arith.constant 0 : i32
    %c0_i32_1 = arith.constant 0 : i32
    return %arg0, %c0_i32, %c0_i32_0 : i32, i32, i32
  }
  func.func @transform_2(%arg0: i32, %arg1: i32) -> (i32, i32, i32) {
    %c0_i32 = arith.constant 0 : i32
    %c0_i32_0 = arith.constant 0 : i32
    %c0_i32_1 = arith.constant 0 : i32
    return %arg0, %c0_i32, %c0_i32_0 : i32, i32, i32
  }
  func.func @transform_3(%arg0: i32, %arg1: i32) -> (i32, i32, i32) {
    %c0_i32 = arith.constant 0 : i32
    %c0_i32_0 = arith.constant 0 : i32
    return %arg0, %arg1, %c0_i32 : i32, i32, i32
  }
}

</mosaic_0001>

<llo_original>
// kernel: tpu_custom_call.1
$region0: #{tpu_custom_call.1}
  #allocation0 [shape = 'u32[]', space=smem, size = 0x4, offset = 0x4, fixed_abs, tag = 'smem constant byte address 0x4 - core index']
  #allocation1 [shape = 'u32[144,128]{1,0:T(1,128)}', space=vmem, size = 0x12000, scoped, tag = 'internal scratch']
  %s0 = inlined_call_operand.vmem [shape: f32[64,16], index: 0, kind: input, shape index: {}]
  %s1 = inlined_call_operand.vmem [shape: f32[2,16,128], index: 1, kind: input, shape index: {}]
  %s2 = inlined_call_operand.vmem [shape: f32[2,1,128], index: 2, kind: input, shape index: {}]
  %s3 = inlined_call_operand.hbm [shape: f32[2,64,128], index: 3, kind: output, shape index: {}]
  %s4 = sld [smem:[#allocation0]]
  $region45: #{tpu_custom_call.1} parent=0
    _
  %s6 = ssub.s32 1, %s4
  %s7 = scalar_select 0, %s6, %s4
  $region1: #{tpu_custom_call.1} parent=0
    #allocation2 [shape = 'u8[65536]{0}', space=vmem, size = 0x10000, scoped, tag = 'output window, operand 0']
    #allocation3 [shape = 's32[2]{0}', space=sflag, size = 0x8, scoped, tag = 'scoped memory for tpu_custom_call.1']
    %8 = vsyncpa [#allocation3], 0
    %s9 = scalar_lea.sflag [#allocation3], 1
    %10 = vsyncpa %s9, 0
    loop: start=0, step=1, limit=4
    $region2: #{tpu_custom_call.1} parent=1 // loop_pre_header
      _
    $region3: #{tpu_custom_call.1} parent=1 // loop_header
      %s12 = sphi 0, %s16
      %p13 = scmp.ge.s32.totalorder %s12, 4
      %s19 = sphi 0, %s31
      %s20 = sphi 0, %s27
      %s21 = sphi 0, %s19
      %s22 = sphi 0, %s20
      %s23 = sphi 0, %s21
      %s24 = sphi 0, %s22
      %s34 = sphi 0, %s36
      %s37 = sphi 0, %s34
      %s38 = sphi 0, %s37
      %s54 = sphi 0, %s38
      %s60 = sphi 0, %s62
      %s63 = sphi 0, %s60
      %s64 = sphi 0, %s63
      %s80 = sphi 0, %s64
      %s86 = sphi 0, %s88
      %s89 = sphi 0, %s86
      %s90 = sphi 0, %s89
      %s106 = sphi 0, %s90
      %s114 = sphi 0, %s116
      %s117 = sphi 0, %s114
      %s118 = sphi 0, %s117
      %s134 = sphi 0, %s118
    $region4: #{tpu_custom_call.1} parent=1 // loop_header_branch
      %15 = sbr.rel (%p13) target = $region8
    $region5: #{tpu_custom_call.1} parent=1 // loop_body
      %s17 = ssub.s32 %s12, 1
      %s18 = ssub.s32 %s12, 2
      %s25 = sadd.s32 1, %s20
      %p26 = scmp.ge.s32.totalorder %s25, 1
      %s27 = scalar_select %p26, 0, %s25
      %s28 = sadd.s32 1, %s19
      %s29 = scalar_select %p26, %s28, %s19
      %p30 = scmp.ge.s32.totalorder %s29, 2
      %s31 = scalar_select %p30, 0, %s29
      %s32 = ssub.s32 %s20, %s27
      %p33 = scmp.eq.s32.totalorder %s32, 0
      %s35 = sadd.s32 %s34, 1
      %s36 = scalar_select %p33, %s34, %s35
      %p39 = pneg %p33
      %p40 = scmp.eq.s32.totalorder %s12, 1
      %p41 = por %p39, %p40
      %p42 = scmp.ne.s32.totalorder %s34, %s37
      %p43 = scmp.eq.s32.totalorder %s12, 0
      %p44 = por %p42, %p43
      %p45 = scmp.ne.s32.totalorder %s34, %s37
      %p46 = scmp.eq.s32.totalorder %s17, 1
      %p47 = por %p45, %p46
      %p48 = scmp.ne.s32.totalorder %s37, %s38
      %p49 = scmp.eq.s32.totalorder %s17, 0
      %p50 = por %p48, %p49
      %p51 = scmp.ne.s32.totalorder %s37, %s38
      %p52 = scmp.eq.s32.totalorder %s18, 1
      %p53 = por %p51, %p52
      %p55 = scmp.ne.s32.totalorder %s38, %s54
      %p56 = scmp.eq.s32.totalorder %s18, 0
      %p57 = por %p55, %p56
      %s58 = ssub.s32 %s19, %s31
      %p59 = scmp.eq.s32.totalorder %s58, 0
      %s61 = sadd.s32 %s60, 1
      %s62 = scalar_select %p59, %s60, %s61
      %p65 = pneg %p59
      %p66 = scmp.eq.s32.totalorder %s12, 1
      %p67 = por %p65, %p66
      %p68 = scmp.ne.s32.totalorder %s60, %s63
      %p69 = scmp.eq.s32.totalorder %s12, 0
      %p70 = por %p68, %p69
      %p71 = scmp.ne.s32.totalorder %s60, %s63
      %p72 = scmp.eq.s32.totalorder %s17, 1
      %p73 = por %p71, %p72
      %p74 = scmp.ne.s32.totalorder %s63, %s64
      %p75 = scmp.eq.s32.totalorder %s17, 0
      %p76 = por %p74, %p75
      %p77 = scmp.ne.s32.totalorder %s63, %s64
      %p78 = scmp.eq.s32.totalorder %s18, 1
      %p79 = por %p77, %p78
      %p81 = scmp.ne.s32.totalorder %s64, %s80
      %p82 = scmp.eq.s32.totalorder %s18, 0
      %p83 = por %p81, %p82
      %s84 = ssub.s32 %s19, %s31
      %p85 = scmp.eq.s32.totalorder %s84, 0
      %s87 = sadd.s32 %s86, 1
      %s88 = scalar_select %p85, %s86, %s87
      %p91 = pneg %p85
      %p92 = scmp.eq.s32.totalorder %s12, 1
      %p93 = por %p91, %p92
      %p94 = scmp.ne.s32.totalorder %s86, %s89
      %p95 = scmp.eq.s32.totalorder %s12, 0
      %p96 = por %p94, %p95
      %p97 = scmp.ne.s32.totalorder %s86, %s89
      %p98 = scmp.eq.s32.totalorder %s17, 1
      %p99 = por %p97, %p98
      %p100 = scmp.ne.s32.totalorder %s89, %s90
      %p101 = scmp.eq.s32.totalorder %s17, 0
      %p102 = por %p100, %p101
      %p103 = scmp.ne.s32.totalorder %s89, %s90
      %p104 = scmp.eq.s32.totalorder %s18, 1
      %p105 = por %p103, %p104
      %p107 = scmp.ne.s32.totalorder %s90, %s106
      %p108 = scmp.eq.s32.totalorder %s18, 0
      %p109 = por %p107, %p108
      %s110 = ssub.s32 %s19, %s31
      %s111 = ssub.s32 %s20, %s27
      %s112 = sor.u32 %s110, %s111
      %p113 = scmp.eq.s32.totalorder %s112, 0
      %s115 = sadd.s32 %s114, 1
      %s116 = scalar_select %p113, %s114, %s115
      %p119 = pneg %p113
      %p120 = scmp.eq.s32.totalorder %s12, 1
      %p121 = por %p119, %p120
      %p122 = scmp.ne.s32.totalorder %s114, %s117
      %p123 = scmp.eq.s32.totalorder %s12, 0
      %p124 = por %p122, %p123
      %p125 = scmp.ne.s32.totalorder %s114, %s117
      %p126 = scmp.eq.s32.totalorder %s17, 1
      %p127 = por %p125, %p126
      %p128 = scmp.ne.s32.totalorder %s117, %s118
      %p129 = scmp.eq.s32.totalorder %s17, 0
      %p130 = por %p128, %p129
      %p131 = scmp.ne.s32.totalorder %s117, %s118
      %p132 = scmp.eq.s32.totalorder %s18, 1
      %p133 = por %p131, %p132
      %p135 = scmp.ne.s32.totalorder %s118, %s134
      %p136 = scmp.eq.s32.totalorder %s18, 0
      %p137 = por %p135, %p136
      %p138 = scmp.le.s32.totalorder 1, %s12
      %p139 = scmp.lt.s32.totalorder %s12, 3
      %p140 = pnand %p138, %p139
      %p141 = pneg %p140
      // Predicated region
      $region9: #{tpu_custom_call.1} parent=5 // pred_check
        _
      $region10: #{tpu_custom_call.1} parent=5 // pred_check_branch
        %143 = sbr.rel (%p140) target = $region12
      $region11: #{tpu_custom_call.1} parent=5 // pred_region
        %s144 = ssub.s32 %s12, 1
        // Predicated region
        $region13: #{tpu_custom_call.1} parent=11 // pred_check
          %p145 = pneg %p50
        $region14: #{tpu_custom_call.1} parent=11 // pred_check_branch
          %147 = sbr.rel (%p145) target = $region16
        $region15: #{tpu_custom_call.1} parent=11 // pred_region
          %s148 = smul.u32 8, %s22
          %p149 = scmp.lt.s32.totalorder %s148, 7
          %s150 = scalar_select %p149, %s148, 7
          %s151 = smul.addr %s150, 8
          %s152 = scalar_lea.vmem %s0, %s151
          %s153 = smul.u32 8, %s22
        $region16: #{tpu_custom_call.1} parent=11 // pred_fallthru
          _
        // Predicated region
        $region17: #{tpu_custom_call.1} parent=11 // pred_check
          %p154 = pneg %p76
        $region18: #{tpu_custom_call.1} parent=11 // pred_check_branch
          %156 = sbr.rel (%p154) target = $region20
        $region19: #{tpu_custom_call.1} parent=11 // pred_region
          %p157 = scmp.lt.s32.totalorder %s21, 1
          %s158 = scalar_select %p157, %s21, 1
          %s159 = smul.addr %s158, 2
          %s160 = smul.addr %s159, 8
          %s161 = scalar_lea.vmem %s1, %s160
        $region20: #{tpu_custom_call.1} parent=11 // pred_fallthru
          _
        // Predicated region
        $region21: #{tpu_custom_call.1} parent=11 // pred_check
          %p162 = pneg %p102
        $region22: #{tpu_custom_call.1} parent=11 // pred_check_branch
          %164 = sbr.rel (%p162) target = $region24
        $region23: #{tpu_custom_call.1} parent=11 // pred_region
          %p165 = scmp.lt.s32.totalorder %s21, 1
          %s166 = scalar_select %p165, %s21, 1
          %s167 = scalar_lea.vmem %s2, %s166
        $region24: #{tpu_custom_call.1} parent=11 // pred_fallthru
          _
      $region12: #{tpu_custom_call.1} parent=5 // pred_fallthru
        _
      %p168 = scmp.lt.s32.totalorder %s12, 2
      // Predicated region
      $region25: #{tpu_custom_call.1} parent=5 // pred_check
        %p169 = pneg %p168
      $region26: #{tpu_custom_call.1} parent=5 // pred_check_branch
        %171 = sbr.rel (%p169) target = $region28
      $region27: #{tpu_custom_call.1} parent=5 // pred_region
        _
      $region28: #{tpu_custom_call.1} parent=5 // pred_fallthru
        _
      %p172 = scmp.le.s32.totalorder 1, %s12
      %p173 = scmp.lt.s32.totalorder %s12, 3
      %p174 = pnand %p172, %p173
      %p175 = pneg %p174
      // Predicated region
      $region29: #{tpu_custom_call.1} parent=5 // pred_check
        _
      $region30: #{tpu_custom_call.1} parent=5 // pred_check_branch
        %177 = sbr.rel (%p174) target = $region32
      $region31: #{tpu_custom_call.1} parent=5 // pred_region
        %s178 = ssub.s32 %s12, 1
        %s179 = smul.u32 8, %s22
        %p180 = scmp.lt.s32.totalorder %s179, 7
        %s181 = scalar_select %p180, %s179, 7
        %s182 = smul.addr %s181, 8
        %s183 = scalar_lea.vmem %s0, %s182
        %p184 = pneg %p50
        %p185 = pneg %p47
        %p186 = scmp.lt.s32.totalorder %s21, 1
        %s187 = scalar_select %p186, %s21, 1
        %s188 = smul.addr %s187, 2
        %s189 = smul.addr %s188, 8
        %s190 = scalar_lea.vmem %s1, %s189
        %p191 = pneg %p76
        %p192 = pneg %p73
        %p193 = scmp.lt.s32.totalorder %s21, 1
        %s194 = scalar_select %p193, %s21, 1
        %s195 = scalar_lea.vmem %s2, %s194
        %p196 = pneg %p102
        %p197 = pneg %p99
        %p198 = pneg %p130
        %p199 = pneg %p127
        %s200 = sand.u32 %s117, 1
        %s201 = scalar_lea.sflag [#allocation3], %s200
        %s202 = sand.u32 %s117, 1
        %s203 = smul.addr %s202, 64
        %s204 = scalar_lea.vmem [#allocation2], %s203
        %s205 = smul.u32 8, %s22
        %p206 = scmp.lt.s32.totalorder %s205, 7
        %s207 = scalar_select %p206, %s205, 7
        %s208 = smul.addr %s207, 8
        %s209 = scalar_lea.vmem %s0, %s208
        %s210 = smul.u32 8, %s22
        %p211 = scmp.lt.s32.totalorder %s21, 1
        %s212 = scalar_select %p211, %s21, 1
        %s213 = smul.addr %s212, 2
        %s214 = smul.addr %s213, 8
        %s215 = scalar_lea.vmem %s1, %s214
        %p216 = scmp.lt.s32.totalorder %s21, 1
        %s217 = scalar_select %p216, %s21, 1
        %s218 = scalar_lea.vmem %s2, %s217
        %s219 = smul.u32 8, %s22
        %v220 = vld [vmem:[%s209] sm:$0xff]
        %v221 = vld [vmem:[%s209 + $0x8] sm:$0xff]
        %v222 = vld [vmem:[%s209 + $0x10] sm:$0xff]
        %v223 = vld [vmem:[%s209 + $0x18] sm:$0xff]
        %v224 = vld [vmem:[%s209 + $0x20] sm:$0xff]
        %v225 = vld [vmem:[%s209 + $0x28] sm:$0xff]
        %v226 = vld [vmem:[%s209 + $0x30] sm:$0xff]
        %v227 = vld [vmem:[%s209 + $0x38] sm:$0xff]
        %v228 = vld [vmem:[%s215] sm:$0xff]
        %v229 = vld [vmem:[%s215 + $0x8] sm:$0xff]
        %v230 = vld [vmem:[%s218] sm:$0x1]
        %v232 = vlaneseq
        %v233 = vshrl.u32 %v232, 7
        %v234 = vsub.s32 0, %v233
        %v235 = vrot.slane %v230, %v234
        %vm237 = vcmask 130048
        %v239 = vsel %vm237, %v220, 0
        %v242 = vsel %vm237, %v221, 0
        %v245 = vsel %vm237, %v222, 0
        %v248 = vsel %vm237, %v223, 0
        %v251 = vsel %vm237, %v224, 0
        %v254 = vsel %vm237, %v225, 0
        %v257 = vsel %vm237, %v226, 0
        %v260 = vsel %vm237, %v227, 0
        %262 = vmatprep.subr.mxu0 0.0
        %263 = vmatpush1.msra.mxu0 %v228
        %264 = vmatprep.subr.mxu0 0.0
        %265 = vmatpush1.msra.mxu0 %v229
        %266 = vmatprep.subr.mxu0 0.0
        %267 = vmatpush1.msra.mxu0 0.0
        %268 = vmatprep.subr.mxu0 0.0
        %269 = vmatpush1.msra.mxu0 0.0
        %270 = vmatprep.subr.mxu0 0.0
        %271 = vmatpush1.msra.mxu0 0.0
        %272 = vmatprep.subr.mxu0 0.0
        %273 = vmatpush1.msra.mxu0 0.0
        %274 = vmatprep.subr.mxu0 0.0
        %275 = vmatpush1.msra.mxu0 0.0
        %276 = vmatprep.subr.mxu0 0.0
        %277 = vmatpush1.msra.mxu0 0.0
        %278 = vmatprep.subr.mxu0 0.0
        %279 = vmatpush1.msra.mxu0 0.0
        %280 = vmatprep.subr.mxu0 0.0
        %281 = vmatpush1.msra.mxu0 0.0
        %282 = vmatprep.subr.mxu0 0.0
        %283 = vmatpush1.msra.mxu0 0.0
        %284 = vmatprep.subr.mxu0 0.0
        %285 = vmatpush1.msra.mxu0 0.0
        %286 = vmatprep.subr.mxu0 0.0
        %287 = vmatpush1.msra.mxu0 0.0
        %288 = vmatprep.subr.mxu0 0.0
        %289 = vmatpush1.msra.mxu0 0.0
        %290 = vmatprep.subr.mxu0 0.0
        %291 = vmatpush1.msra.mxu0 0.0
        %292 = vmatprep.subr.mxu0 0.0
        %293 = vmatpush1.msra.mxu0 0.0
        %294 = vmatprep.subr.mxu0 0.0
        %295 = vmatpush1.msra.mxu0 0.0
        %296 = vmatprep.subr.mxu0 0.0
        %297 = vmatpush1.msra.mxu0 0.0
        %298 = vmatprep.subr.mxu0 0.0
        %299 = vmatpush1.msra.mxu0 0.0
        %300 = vmatprep.subr.mxu0 0.0
        %301 = vmatpush1.msra.mxu0 0.0
        %302 = vmatprep.subr.mxu0 0.0
        %303 = vmatpush1.msra.mxu0 0.0
        %304 = vmatprep.subr.mxu0 0.0
        %305 = vmatpush1.msra.mxu0 0.0
        %306 = vmatprep.subr.mxu0 0.0
        %307 = vmatpush1.msra.mxu0 0.0
        %308 = vmatprep.subr.mxu0 0.0
        %309 = vmatpush1.msra.mxu0 0.0
        %310 = vmatprep.subr.mxu0 0.0
        %311 = vmatpush1.msra.mxu0 0.0
        %312 = vmatprep.subr.mxu0 0.0
        %313 = vmatpush1.msra.mxu0 0.0
        %314 = vmatprep.subr.mxu0 0.0
        %315 = vmatpush1.msra.mxu0 0.0
        %316 = vmatprep.subr.mxu0 0.0
        %317 = vmatpush1.msra.mxu0 0.0
        %318 = vmatprep.subr.mxu0 0.0
        %319 = vmatpush1.msra.mxu0 0.0
        %320 = vmatprep.subr.mxu0 0.0
        %321 = vmatpush1.msra.mxu0 0.0
        %322 = vmatprep.subr.mxu0 0.0
        %323 = vmatpush1.msra.mxu0 0.0
        %324 = vmatprep.subr.mxu0 0.0
        %325 = vmatpush1.msra.mxu0 0.0
        %326 = vmatprep.mubr.f32.mxu0 0.0
        %327 = vmatmul.mubr.f32.gmra.mrb[0].mxu0 %v239
        %v328 = vpop.f32.mrb[0].mxu0
        %v329 = vadd.f32 %v235, %v328
        %v330 = vpop.f32.mrb[0].mxu0
        %331 = vmatprep.mubr.f32.mxu0 0.0
        %332 = vmatmul.mubr.f32.gmra.mrb[0].mxu0 %v242
        %v333 = vpop.f32.mrb[0].mxu0
        %v334 = vadd.f32 %v235, %v333
        %v335 = vpop.f32.mrb[0].mxu0
        %336 = vmatprep.mubr.f32.mxu0 0.0
        %337 = vmatmul.mubr.f32.gmra.mrb[0].mxu0 %v245
        %v338 = vpop.f32.mrb[0].mxu0
        %v339 = vadd.f32 %v235, %v338
        %v340 = vpop.f32.mrb[0].mxu0
        %341 = vmatprep.mubr.f32.mxu0 0.0
        %342 = vmatmul.mubr.f32.gmra.mrb[0].mxu0 %v248
        %v343 = vpop.f32.mrb[0].mxu0
        %v344 = vadd.f32 %v235, %v343
        %v345 = vpop.f32.mrb[0].mxu0
        %346 = vmatprep.mubr.f32.mxu0 0.0
        %347 = vmatmul.mubr.f32.gmra.mrb[0].mxu0 %v251
        %v348 = vpop.f32.mrb[0].mxu0
        %v349 = vadd.f32 %v235, %v348
        %v350 = vpop.f32.mrb[0].mxu0
        %351 = vmatprep.mubr.f32.mxu0 0.0
        %352 = vmatmul.mubr.f32.gmra.mrb[0].mxu0 %v254
        %v353 = vpop.f32.mrb[0].mxu0
        %v354 = vadd.f32 %v235, %v353
        %v355 = vpop.f32.mrb[0].mxu0
        %356 = vmatprep.mubr.f32.mxu0 0.0
        %357 = vmatmul.mubr.f32.gmra.mrb[0].mxu0 %v257
        %v358 = vpop.f32.mrb[0].mxu0
        %v359 = vadd.f32 %v235, %v358
        %v360 = vpop.f32.mrb[0].mxu0
        %361 = vmatprep.mubr.f32.mxu0 0.0
        %362 = vmatmul.mubr.f32.gmra.mrb[0].mxu0 %v260
        %v363 = vpop.f32.mrb[0].mxu0
        %v364 = vadd.f32 %v235, %v363
        %v365 = vpop.f32.mrb[0].mxu0
        %366 = vdwg.mxu0
        %367 = vst [vmem:[%s204] sm:$0xff] %v329
        %368 = vst [vmem:[%s204 + $0x8] sm:$0xff] %v334
        %369 = vst [vmem:[%s204 + $0x10] sm:$0xff] %v339
        %370 = vst [vmem:[%s204 + $0x18] sm:$0xff] %v344
        %371 = vst [vmem:[%s204 + $0x20] sm:$0xff] %v349
        %372 = vst [vmem:[%s204 + $0x28] sm:$0xff] %v354
        %373 = vst [vmem:[%s204 + $0x30] sm:$0xff] %v359
        %374 = vst [vmem:[%s204 + $0x38] sm:$0xff] %v364
        %s375 = sand.u32 %s117, 1
        %s376 = scalar_lea.sflag [#allocation3], %s375
        %s377 = sand.u32 %s117, 1
        %s378 = smul.addr %s377, 64
        %s379 = scalar_lea.vmem [#allocation2], %s378
        // Predicated region
        $region33: #{tpu_custom_call.1} parent=31 // pred_check
          %p380 = pneg %p127
        $region34: #{tpu_custom_call.1} parent=31 // pred_check_branch
          %382 = sbr.rel (%p380) target = $region36
        $region35: #{tpu_custom_call.1} parent=31 // pred_region
          %s383 = smul.u32 8, %s22
          %s385 = ssub.s32 1024, 1024
          %386 = vsyncadd %s376, %s385
          %s387 = smul.addr %s21, 8
          %s388 = sadd.s32 %s383, %s387
          %s389 = smul.addr %s388, 128
          %s390 = scalar_lea.hbm %s3, %s389
          %s391 = sshll.u32 %s379, 4
          %s392 = int_to_ptr.vmem [resolvable:$true] %s391
          %397 = dma.vmem_to_hbm [thread:$0]  %s392, 1024, %s390, %s376, 128, 128, 8
        $region36: #{tpu_custom_call.1} parent=31 // pred_fallthru
          _
      $region32: #{tpu_custom_call.1} parent=5 // pred_fallthru
        _
      %p398 = scmp.le.s32.totalorder 2, %s12
      // Predicated region
      $region37: #{tpu_custom_call.1} parent=5 // pred_check
        %p399 = pneg %p398
      $region38: #{tpu_custom_call.1} parent=5 // pred_check_branch
        %401 = sbr.rel (%p399) target = $region40
      $region39: #{tpu_custom_call.1} parent=5 // pred_region
        %s402 = ssub.s32 %s12, 2
        // Predicated region
        $region41: #{tpu_custom_call.1} parent=39 // pred_check
          %p403 = pneg %p133
        $region42: #{tpu_custom_call.1} parent=39 // pred_check_branch
          %405 = sbr.rel (%p403) target = $region44
        $region43: #{tpu_custom_call.1} parent=39 // pred_region
          %s406 = sand.u32 %s118, 1
          %s407 = scalar_lea.sflag [#allocation3], %s406
          %s408 = sand.u32 %s118, 1
          %s409 = smul.addr %s408, 64
          %s410 = scalar_lea.vmem [#allocation2], %s409
          %411 = dma.done %s407, 1024
        $region44: #{tpu_custom_call.1} parent=39 // pred_fallthru
          _
      $region40: #{tpu_custom_call.1} parent=5 // pred_fallthru
        _
    $region6: #{tpu_custom_call.1} parent=1 // loop_footer
      %s16 = sadd.s32 1, %s12
    $region7: #{tpu_custom_call.1} parent=1 // loop_footer_branch
      %11 = sbr.rel target = $region3
    $region8: #{tpu_custom_call.1} parent=1 // loop_exit
      _
    %412 = vsyncpa [#allocation3], 1
    %s413 = scalar_lea.sflag [#allocation3], 1
    %414 = vsyncpa %s413, 1

// kernel: tpu_custom_call.1
$region0: #{tpu_custom_call.1}
  #allocation0 [shape = 'u32[]', space=smem, size = 0x4, offset = 0x4, fixed_abs, tag = 'smem constant byte address 0x4 - core index']
  #allocation1 [shape = 'u32[144,128]{1,0:T(1,128)}', space=vmem, size = 0x12000, scoped, tag = 'internal scratch']
  %s0 = inlined_call_operand.vmem [shape: f32[64,16], index: 0, kind: input, shape index: {}]
  %s1 = inlined_call_operand.vmem [shape: f32[2,16,128], index: 1, kind: input, shape index: {}]
  %s2 = inlined_call_operand.vmem [shape: f32[2,1,128], index: 2, kind: input, shape index: {}]
  %s3 = inlined_call_operand.hbm [shape: f32[2,64,128], index: 3, kind: output, shape index: {}]
  %s4 = sld [smem:[#allocation0]]
  $region45: #{tpu_custom_call.1} parent=0
    _
  %s6 = ssub.s32 1, %s4
  %s7 = scalar_select 0, %s6, %s4
  $region1: #{tpu_custom_call.1} parent=0
    #allocation2 [shape = 'u8[65536]{0}', space=vmem, size = 0x10000, scoped, tag = 'output window, operand 0']
    #allocation3 [shape = 's32[2]{0}', space=sflag, size = 0x8, scoped, tag = 'scoped memory for tpu_custom_call.1']
    %8 = vsyncpa [#allocation3], 0
    %s9 = scalar_lea.sflag [#allocation3], 1
    %10 = vsyncpa %s9, 0
    loop: start=0, step=1, limit=4
    $region2: #{tpu_custom_call.1} parent=1 // loop_pre_header
      _
    $region3: #{tpu_custom_call.1} parent=1 // loop_header
      %s12 = sphi 0, %s16
      %p13 = scmp.ge.s32.totalorder %s12, 4
      %s19 = sphi 0, %s31
      %s20 = sphi 0, %s27
      %s21 = sphi 0, %s19
      %s22 = sphi 0, %s20
      %s23 = sphi 0, %s21
      %s24 = sphi 0, %s22
      %s34 = sphi 0, %s36
      %s37 = sphi 0, %s34
      %s38 = sphi 0, %s37
      %s54 = sphi 0, %s38
      %s60 = sphi 0, %s62
      %s63 = sphi 0, %s60
      %s64 = sphi 0, %s63
      %s80 = sphi 0, %s64
      %s86 = sphi 0, %s88
      %s89 = sphi 0, %s86
      %s90 = sphi 0, %s89
      %s106 = sphi 0, %s90
      %s114 = sphi 0, %s116
      %s117 = sphi 0, %s114
      %s118 = sphi 0, %s117
      %s134 = sphi 0, %s118
    $region4: #{tpu_custom_call.1} parent=1 // loop_header_branch
      %15 = sbr.rel (%p13) target = $region8
    $region5: #{tpu_custom_call.1} parent=1 // loop_body
      %s17 = ssub.s32 %s12, 1
      %s18 = ssub.s32 %s12, 2
      %s25 = sadd.s32 1, %s20
      %p26 = scmp.ge.s32.totalorder %s25, 1
      %s27 = scalar_select %p26, 0, %s25
      %s28 = sadd.s32 1, %s19
      %s29 = scalar_select %p26, %s28, %s19
      %p30 = scmp.ge.s32.totalorder %s29, 2
      %s31 = scalar_select %p30, 0, %s29
      %s32 = ssub.s32 %s20, %s27
      %p33 = scmp.eq.s32.totalorder %s32, 0
      %s35 = sadd.s32 %s34, 1
      %s36 = scalar_select %p33, %s34, %s35
      %p39 = pneg %p33
      %p40 = scmp.eq.s32.totalorder %s12, 1
      %p41 = por %p39, %p40
      %p42 = scmp.ne.s32.totalorder %s34, %s37
      %p43 = scmp.eq.s32.totalorder %s12, 0
      %p44 = por %p42, %p43
      %p45 = scmp.ne.s32.totalorder %s34, %s37
      %p46 = scmp.eq.s32.totalorder %s17, 1
      %p47 = por %p45, %p46
      %p48 = scmp.ne.s32.totalorder %s37, %s38
      %p49 = scmp.eq.s32.totalorder %s17, 0
      %p50 = por %p48, %p49
      %p51 = scmp.ne.s32.totalorder %s37, %s38
      %p52 = scmp.eq.s32.totalorder %s18, 1
      %p53 = por %p51, %p52
      %p55 = scmp.ne.s32.totalorder %s38, %s54
      %p56 = scmp.eq.s32.totalorder %s18, 0
      %p57 = por %p55, %p56
      %s58 = ssub.s32 %s19, %s31
      %p59 = scmp.eq.s32.totalorder %s58, 0
      %s61 = sadd.s32 %s60, 1
      %s62 = scalar_select %p59, %s60, %s61
      %p65 = pneg %p59
      %p66 = scmp.eq.s32.totalorder %s12, 1
      %p67 = por %p65, %p66
      %p68 = scmp.ne.s32.totalorder %s60, %s63
      %p69 = scmp.eq.s32.totalorder %s12, 0
      %p70 = por %p68, %p69
      %p71 = scmp.ne.s32.totalorder %s60, %s63
      %p72 = scmp.eq.s32.totalorder %s17, 1
      %p73 = por %p71, %p72
      %p74 = scmp.ne.s32.totalorder %s63, %s64
      %p75 = scmp.eq.s32.totalorder %s17, 0
      %p76 = por %p74, %p75
      %p77 = scmp.ne.s32.totalorder %s63, %s64
      %p78 = scmp.eq.s32.totalorder %s18, 1
      %p79 = por %p77, %p78
      %p81 = scmp.ne.s32.totalorder %s64, %s80
      %p82 = scmp.eq.s32.totalorder %s18, 0
      %p83 = por %p81, %p82
      %s84 = ssub.s32 %s19, %s31
      %p85 = scmp.eq.s32.totalorder %s84, 0
      %s87 = sadd.s32 %s86, 1
      %s88 = scalar_select %p85, %s86, %s87
      %p91 = pneg %p85
      %p92 = scmp.eq.s32.totalorder %s12, 1
      %p93 = por %p91, %p92
      %p94 = scmp.ne.s32.totalorder %s86, %s89
      %p95 = scmp.eq.s32.totalorder %s12, 0
      %p96 = por %p94, %p95
      %p97 = scmp.ne.s32.totalorder %s86, %s89
      %p98 = scmp.eq.s32.totalorder %s17, 1
      %p99 = por %p97, %p98
      %p100 = scmp.ne.s32.totalorder %s89, %s90
      %p101 = scmp.eq.s32.totalorder %s17, 0
      %p102 = por %p100, %p101
      %p103 = scmp.ne.s32.totalorder %s89, %s90
      %p104 = scmp.eq.s32.totalorder %s18, 1
      %p105 = por %p103, %p104
      %p107 = scmp.ne.s32.totalorder %s90, %s106
      %p108 = scmp.eq.s32.totalorder %s18, 0
      %p109 = por %p107, %p108
      %s110 = ssub.s32 %s19, %s31
      %s111 = ssub.s32 %s20, %s27
      %s112 = sor.u32 %s110, %s111
      %p113 = scmp.eq.s32.totalorder %s112, 0
      %s115 = sadd.s32 %s114, 1
      %s116 = scalar_select %p113, %s114, %s115
      %p119 = pneg %p113
      %p120 = scmp.eq.s32.totalorder %s12, 1
      %p121 = por %p119, %p120
      %p122 = scmp.ne.s32.totalorder %s114, %s117
      %p123 = scmp.eq.s32.totalorder %s12, 0
      %p124 = por %p122, %p123
      %p125 = scmp.ne.s32.totalorder %s114, %s117
      %p126 = scmp.eq.s32.totalorder %s17, 1
      %p127 = por %p125, %p126
      %p128 = scmp.ne.s32.totalorder %s117, %s118
      %p129 = scmp.eq.s32.totalorder %s17, 0
      %p130 = por %p128, %p129
      %p131 = scmp.ne.s32.totalorder %s117, %s118
      %p132 = scmp.eq.s32.totalorder %s18, 1
      %p133 = por %p131, %p132
      %p135 = scmp.ne.s32.totalorder %s118, %s134
      %p136 = scmp.eq.s32.totalorder %s18, 0
      %p137 = por %p135, %p136
      %p138 = scmp.le.s32.totalorder 1, %s12
      %p139 = scmp.lt.s32.totalorder %s12, 3
      %p140 = pnand %p138, %p139
      %p141 = pneg %p140
      // Predicated region
      $region9: #{tpu_custom_call.1} parent=5 // pred_check
        _
      $region10: #{tpu_custom_call.1} parent=5 // pred_check_branch
        %143 = sbr.rel (%p140) target = $region12
      $region11: #{tpu_custom_call.1} parent=5 // pred_region
        %s144 = ssub.s32 %s12, 1
        // Predicated region
        $region13: #{tpu_custom_call.1} parent=11 // pred_check
          %p145 = pneg %p50
        $region14: #{tpu_custom_call.1} parent=11 // pred_check_branch
          %147 = sbr.rel (%p145) target = $region16
        $region15: #{tpu_custom_call.1} parent=11 // pred_region
          %s148 = smul.u32 8, %s22
          %p149 = scmp.lt.s32.totalorder %s148, 7
          %s150 = scalar_select %p149, %s148, 7
          %s151 = smul.addr %s150, 8
          %s152 = scalar_lea.vmem %s0, %s151
          %s153 = smul.u32 8, %s22
        $region16: #{tpu_custom_call.1} parent=11 // pred_fallthru
          _
      $region12: #{tpu_custom_call.1} parent=5 // pred_fallthru
        _
      %p154 = scmp.lt.s32.totalorder %s12, 2
      // Predicated region
      $region17: #{tpu_custom_call.1} parent=5 // pred_check
        %p155 = pneg %p154
      $region18: #{tpu_custom_call.1} parent=5 // pred_check_branch
        %157 = sbr.rel (%p155) target = $region20
      $region19: #{tpu_custom_call.1} parent=5 // pred_region
        // Predicated region
        $region21: #{tpu_custom_call.1} parent=19 // pred_check
          %p158 = pneg %p70
        $region22: #{tpu_custom_call.1} parent=19 // pred_check_branch
          %160 = sbr.rel (%p158) target = $region24
        $region23: #{tpu_custom_call.1} parent=19 // pred_region
          %p161 = scmp.lt.s32.totalorder %s19, 1
          %s162 = scalar_select %p161, %s19, 1
          %s163 = smul.addr %s162, 2
          %s164 = smul.addr %s163, 8
          %s165 = scalar_lea.vmem %s1, %s164
        $region24: #{tpu_custom_call.1} parent=19 // pred_fallthru
          _
        // Predicated region
        $region25: #{tpu_custom_call.1} parent=19 // pred_check
          %p166 = pneg %p96
        $region26: #{tpu_custom_call.1} parent=19 // pred_check_branch
          %168 = sbr.rel (%p166) target = $region28
        $region27: #{tpu_custom_call.1} parent=19 // pred_region
          %p169 = scmp.lt.s32.totalorder %s19, 1
          %s170 = scalar_select %p169, %s19, 1
          %s171 = scalar_lea.vmem %s2, %s170
        $region28: #{tpu_custom_call.1} parent=19 // pred_fallthru
          _
      $region20: #{tpu_custom_call.1} parent=5 // pred_fallthru
        _
      %p172 = scmp.le.s32.totalorder 1, %s12
      %p173 = scmp.lt.s32.totalorder %s12, 3
      %p174 = pnand %p172, %p173
      %p175 = pneg %p174
      // Predicated region
      $region29: #{tpu_custom_call.1} parent=5 // pred_check
        _
      $region30: #{tpu_custom_call.1} parent=5 // pred_check_branch
        %177 = sbr.rel (%p174) target = $region32
      $region31: #{tpu_custom_call.1} parent=5 // pred_region
        %s178 = ssub.s32 %s12, 1
        %s179 = smul.u32 8, %s22
        %p180 = scmp.lt.s32.totalorder %s179, 7
        %s181 = scalar_select %p180, %s179, 7
        %s182 = smul.addr %s181, 8
        %s183 = scalar_lea.vmem %s0, %s182
        %p184 = pneg %p50
        %p185 = pneg %p47
        %p186 = scmp.lt.s32.totalorder %s21, 1
        %s187 = scalar_select %p186, %s21, 1
        %s188 = smul.addr %s187, 2
        %s189 = smul.addr %s188, 8
        %s190 = scalar_lea.vmem %s1, %s189
        %p191 = pneg %p76
        %p192 = pneg %p73
        %p193 = scmp.lt.s32.totalorder %s21, 1
        %s194 = scalar_select %p193, %s21, 1
        %s195 = scalar_lea.vmem %s2, %s194
        %p196 = pneg %p102
        %p197 = pneg %p99
        %p198 = pneg %p130
        %p199 = pneg %p127
        %s200 = sand.u32 %s117, 1
        %s201 = scalar_lea.sflag [#allocation3], %s200
        %s202 = sand.u32 %s117, 1
        %s203 = smul.addr %s202, 64
        %s204 = scalar_lea.vmem [#allocation2], %s203
        %s205 = smul.u32 8, %s22
        %p206 = scmp.lt.s32.totalorder %s205, 7
        %s207 = scalar_select %p206, %s205, 7
        %s208 = smul.addr %s207, 8
        %s209 = scalar_lea.vmem %s0, %s208
        %s210 = smul.u32 8, %s22
        %p211 = scmp.lt.s32.totalorder %s21, 1
        %s212 = scalar_select %p211, %s21, 1
        %s213 = smul.addr %s212, 2
        %s214 = smul.addr %s213, 8
        %s215 = scalar_lea.vmem %s1, %s214
        %p216 = scmp.lt.s32.totalorder %s21, 1
        %s217 = scalar_select %p216, %s21, 1
        %s218 = scalar_lea.vmem %s2, %s217
        %s219 = smul.u32 8, %s22
        %v220 = vld [vmem:[%s209] sm:$0xff]
        %v221 = vld [vmem:[%s209 + $0x8] sm:$0xff]
        %v222 = vld [vmem:[%s209 + $0x10] sm:$0xff]
        %v223 = vld [vmem:[%s209 + $0x18] sm:$0xff]
        %v224 = vld [vmem:[%s209 + $0x20] sm:$0xff]
        %v225 = vld [vmem:[%s209 + $0x28] sm:$0xff]
        %v226 = vld [vmem:[%s209 + $0x30] sm:$0xff]
        %v227 = vld [vmem:[%s209 + $0x38] sm:$0xff]
        %v228 = vld [vmem:[%s215] sm:$0xff]
        %v229 = vld [vmem:[%s215 + $0x8] sm:$0xff]
        %v230 = vld [vmem:[%s218] sm:$0x1]
        %v232 = vlaneseq
        %v233 = vshrl.u32 %v232, 7
        %v234 = vsub.s32 0, %v233
        %v235 = vrot.slane %v230, %v234
        %vm237 = vcmask 130048
        %v239 = vsel %vm237, %v220, 0
        %v242 = vsel %vm237, %v221, 0
        %v245 = vsel %vm237, %v222, 0
        %v248 = vsel %vm237, %v223, 0
        %v251 = vsel %vm237, %v224, 0
        %v254 = vsel %vm237, %v225, 0
        %v257 = vsel %vm237, %v226, 0
        %v260 = vsel %vm237, %v227, 0
        %262 = vmatprep.subr.mxu0 0.0
        %263 = vmatpush1.msra.mxu0 %v228
        %264 = vmatprep.subr.mxu0 0.0
        %265 = vmatpush1.msra.mxu0 %v229
        %266 = vmatprep.subr.mxu0 0.0
        %267 = vmatpush1.msra.mxu0 0.0
        %268 = vmatprep.subr.mxu0 0.0
        %269 = vmatpush1.msra.mxu0 0.0
        %270 = vmatprep.subr.mxu0 0.0
        %271 = vmatpush1.msra.mxu0 0.0
        %272 = vmatprep.subr.mxu0 0.0
        %273 = vmatpush1.msra.mxu0 0.0
        %274 = vmatprep.subr.mxu0 0.0
        %275 = vmatpush1.msra.mxu0 0.0
        %276 = vmatprep.subr.mxu0 0.0
        %277 = vmatpush1.msra.mxu0 0.0
        %278 = vmatprep.subr.mxu0 0.0
        %279 = vmatpush1.msra.mxu0 0.0
        %280 = vmatprep.subr.mxu0 0.0
        %281 = vmatpush1.msra.mxu0 0.0
        %282 = vmatprep.subr.mxu0 0.0
        %283 = vmatpush1.msra.mxu0 0.0
        %284 = vmatprep.subr.mxu0 0.0
        %285 = vmatpush1.msra.mxu0 0.0
        %286 = vmatprep.subr.mxu0 0.0
        %287 = vmatpush1.msra.mxu0 0.0
        %288 = vmatprep.subr.mxu0 0.0
        %289 = vmatpush1.msra.mxu0 0.0
        %290 = vmatprep.subr.mxu0 0.0
        %291 = vmatpush1.msra.mxu0 0.0
        %292 = vmatprep.subr.mxu0 0.0
        %293 = vmatpush1.msra.mxu0 0.0
        %294 = vmatprep.subr.mxu0 0.0
        %295 = vmatpush1.msra.mxu0 0.0
        %296 = vmatprep.subr.mxu0 0.0
        %297 = vmatpush1.msra.mxu0 0.0
        %298 = vmatprep.subr.mxu0 0.0
        %299 = vmatpush1.msra.mxu0 0.0
        %300 = vmatprep.subr.mxu0 0.0
        %301 = vmatpush1.msra.mxu0 0.0
        %302 = vmatprep.subr.mxu0 0.0
        %303 = vmatpush1.msra.mxu0 0.0
        %304 = vmatprep.subr.mxu0 0.0
        %305 = vmatpush1.msra.mxu0 0.0
        %306 = vmatprep.subr.mxu0 0.0
        %307 = vmatpush1.msra.mxu0 0.0
        %308 = vmatprep.subr.mxu0 0.0
        %309 = vmatpush1.msra.mxu0 0.0
        %310 = vmatprep.subr.mxu0 0.0
        %311 = vmatpush1.msra.mxu0 0.0
        %312 = vmatprep.subr.mxu0 0.0
        %313 = vmatpush1.msra.mxu0 0.0
        %314 = vmatprep.subr.mxu0 0.0
        %315 = vmatpush1.msra.mxu0 0.0
        %316 = vmatprep.subr.mxu0 0.0
        %317 = vmatpush1.msra.mxu0 0.0
        %318 = vmatprep.subr.mxu0 0.0
        %319 = vmatpush1.msra.mxu0 0.0
        %320 = vmatprep.subr.mxu0 0.0
        %321 = vmatpush1.msra.mxu0 0.0
        %322 = vmatprep.subr.mxu0 0.0
        %323 = vmatpush1.msra.mxu0 0.0
        %324 = vmatprep.subr.mxu0 0.0
        %325 = vmatpush1.msra.mxu0 0.0
        %326 = vmatprep.mubr.f32.mxu0 0.0
        %327 = vmatmul.mubr.f32.gmra.mrb[0].mxu0 %v239
        %v328 = vpop.f32.mrb[0].mxu0
        %v329 = vadd.f32 %v235, %v328
        %v330 = vpop.f32.mrb[0].mxu0
        %331 = vmatprep.mubr.f32.mxu0 0.0
        %332 = vmatmul.mubr.f32.gmra.mrb[0].mxu0 %v242
        %v333 = vpop.f32.mrb[0].mxu0
        %v334 = vadd.f32 %v235, %v333
        %v335 = vpop.f32.mrb[0].mxu0
        %336 = vmatprep.mubr.f32.mxu0 0.0
        %337 = vmatmul.mubr.f32.gmra.mrb[0].mxu0 %v245
        %v338 = vpop.f32.mrb[0].mxu0
        %v339 = vadd.f32 %v235, %v338
        %v340 = vpop.f32.mrb[0].mxu0
        %341 = vmatprep.mubr.f32.mxu0 0.0
        %342 = vmatmul.mubr.f32.gmra.mrb[0].mxu0 %v248
        %v343 = vpop.f32.mrb[0].mxu0
        %v344 = vadd.f32 %v235, %v343
        %v345 = vpop.f32.mrb[0].mxu0
        %346 = vmatprep.mubr.f32.mxu0 0.0
        %347 = vmatmul.mubr.f32.gmra.mrb[0].mxu0 %v251
        %v348 = vpop.f32.mrb[0].mxu0
        %v349 = vadd.f32 %v235, %v348
        %v350 = vpop.f32.mrb[0].mxu0
        %351 = vmatprep.mubr.f32.mxu0 0.0
        %352 = vmatmul.mubr.f32.gmra.mrb[0].mxu0 %v254
        %v353 = vpop.f32.mrb[0].mxu0
        %v354 = vadd.f32 %v235, %v353
        %v355 = vpop.f32.mrb[0].mxu0
        %356 = vmatprep.mubr.f32.mxu0 0.0
        %357 = vmatmul.mubr.f32.gmra.mrb[0].mxu0 %v257
        %v358 = vpop.f32.mrb[0].mxu0
        %v359 = vadd.f32 %v235, %v358
        %v360 = vpop.f32.mrb[0].mxu0
        %361 = vmatprep.mubr.f32.mxu0 0.0
        %362 = vmatmul.mubr.f32.gmra.mrb[0].mxu0 %v260
        %v363 = vpop.f32.mrb[0].mxu0
        %v364 = vadd.f32 %v235, %v363
        %v365 = vpop.f32.mrb[0].mxu0
        %366 = vdwg.mxu0
        %367 = vst [vmem:[%s204] sm:$0xff] %v329
        %368 = vst [vmem:[%s204 + $0x8] sm:$0xff] %v334
        %369 = vst [vmem:[%s204 + $0x10] sm:$0xff] %v339
        %370 = vst [vmem:[%s204 + $0x18] sm:$0xff] %v344
        %371 = vst [vmem:[%s204 + $0x20] sm:$0xff] %v349
        %372 = vst [vmem:[%s204 + $0x28] sm:$0xff] %v354
        %373 = vst [vmem:[%s204 + $0x30] sm:$0xff] %v359
        %374 = vst [vmem:[%s204 + $0x38] sm:$0xff] %v364
        %s375 = sand.u32 %s117, 1
        %s376 = scalar_lea.sflag [#allocation3], %s375
        %s377 = sand.u32 %s117, 1
        %s378 = smul.addr %s377, 64
        %s379 = scalar_lea.vmem [#allocation2], %s378
        // Predicated region
        $region33: #{tpu_custom_call.1} parent=31 // pred_check
          %p380 = pneg %p127
        $region34: #{tpu_custom_call.1} parent=31 // pred_check_branch
          %382 = sbr.rel (%p380) target = $region36
        $region35: #{tpu_custom_call.1} parent=31 // pred_region
          %s383 = smul.u32 8, %s22
          %s385 = ssub.s32 1024, 1024
          %386 = vsyncadd %s376, %s385
          %s387 = smul.addr %s21, 8
          %s388 = sadd.s32 %s383, %s387
          %s389 = smul.addr %s388, 128
          %s390 = scalar_lea.hbm %s3, %s389
          %s391 = sshll.u32 %s379, 4
          %s392 = int_to_ptr.vmem [resolvable:$true] %s391
          %397 = dma.vmem_to_hbm [thread:$0]  %s392, 1024, %s390, %s376, 128, 128, 8
        $region36: #{tpu_custom_call.1} parent=31 // pred_fallthru
          _
      $region32: #{tpu_custom_call.1} parent=5 // pred_fallthru
        _
      %p398 = scmp.le.s32.totalorder 2, %s12
      // Predicated region
      $region37: #{tpu_custom_call.1} parent=5 // pred_check
        %p399 = pneg %p398
      $region38: #{tpu_custom_call.1} parent=5 // pred_check_branch
        %401 = sbr.rel (%p399) target = $region40
      $region39: #{tpu_custom_call.1} parent=5 // pred_region
        %s402 = ssub.s32 %s12, 2
        // Predicated region
        $region41: #{tpu_custom_call.1} parent=39 // pred_check
          %p403 = pneg %p133
        $region42: #{tpu_custom_call.1} parent=39 // pred_check_branch
          %405 = sbr.rel (%p403) target = $region44
        $region43: #{tpu_custom_call.1} parent=39 // pred_region
          %s406 = sand.u32 %s118, 1
          %s407 = scalar_lea.sflag [#allocation3], %s406
          %s408 = sand.u32 %s118, 1
          %s409 = smul.addr %s408, 64
          %s410 = scalar_lea.vmem [#allocation2], %s409
          %411 = dma.done %s407, 1024
        $region44: #{tpu_custom_call.1} parent=39 // pred_fallthru
          _
      $region40: #{tpu_custom_call.1} parent=5 // pred_fallthru
        _
    $region6: #{tpu_custom_call.1} parent=1 // loop_footer
      %s16 = sadd.s32 1, %s12
    $region7: #{tpu_custom_call.1} parent=1 // loop_footer_branch
      %11 = sbr.rel target = $region3
    $region8: #{tpu_custom_call.1} parent=1 // loop_exit
      _
    %412 = vsyncpa [#allocation3], 1
    %s413 = scalar_lea.sflag [#allocation3], 1
    %414 = vsyncpa %s413, 1

</llo_original>
